<compile_context>
chip_gen: v6e
topology: v6e:2x2x1
jax: 0.10.0
libtpu: 0.0.40
codegen_flags: <defaults>
</compile_context>

<pallas_src>
import functools

import numpy as np
import jax
import jax.numpy as jnp
from jax import lax
from jax.experimental import pallas as pl
from jax.experimental.pallas import tpu as pltpu

# keep the pure-JAX reference (and any XLA fallback math) in full f32 precision
jax.config.update("jax_default_matmul_precision", "highest")

F32 = jnp.float32


# --------------------------------------------------------------------------- #
# pltpu.roll direction probe (run once, outside the hot path)
# --------------------------------------------------------------------------- #
def _roll_probe_kernel(x_ref, o_ref):
    o_ref[...] = pltpu.roll(x_ref[...], 1, 1)


def detect_roll_sign():
    """Returns +1 if pltpu.roll(x, s)[i] == x[i - s] (np.roll convention), else -1."""
    x = jnp.broadcast_to(lax.iota(F32, 128)[None, :], (8, 128))
    y = pl.pallas_call(
        _roll_probe_kernel,
        out_shape=jax.ShapeDtypeStruct((8, 128), F32),
    )(x)
    v = float(y[0, 0])
    assert v in (127.0, 1.0), f"unexpected roll probe value {v}"
    return 1 if v == 127.0 else -1


# --------------------------------------------------------------------------- #
# Fused CPGM forward kernel (one grid step per batch element)
# --------------------------------------------------------------------------- #
def _cpgm_kernel(x_ref, kpool_ref,
                 wq_ref, bq_ref, wk_ref, bk_ref, wl_ref, bl_ref,
                 whd_ref, bhd_ref, wvd_ref, bvd_ref,
                 whp_ref, wvp_ref, bhv_ref,
                 wo_ref, bo_ref, wp_ref, bp_ref, lng_ref, lnb_ref,
                 wdw_ref, bdw_ref, wpw_ref, bpw_ref,
                 kup_ref, o_ref, *, H2, W2, scale, roll_sign):
    N = H2 * W2
    dot = functools.partial(jnp.dot, preferred_element_type=F32)

    # ---- pool: AvgPool2d(2,2) as one matmul against a precomputed matrix ----
    x = x_ref[0]                                   # (C, H*W)  channels on sublanes
    xp = dot(x, kpool_ref[...])                    # (C, N)    N = H2*W2 on lanes

    # boundary masks for the roll-based depthwise shifts (built once, reused)
    lane = lax.broadcasted_iota(jnp.int32, (1, N), 1)
    top_row = lane < W2
    bot_row = lane >= N - W2
    left_col = (lane % W2) == 0
    right_col = (lane % W2) == (W2 - 1)

    def shifted(v, dh, dw):
        # array whose (h, w) position holds v[h+dh, w+dw]; zero outside the image
        d = dh * W2 + dw
        y = v if d == 0 else pltpu.roll(v, ((-d) * roll_sign) % N, 1)
        mask = None
        if dh == -1:
            mask = top_row
        elif dh == 1:
            mask = bot_row
        if dw == -1:
            mask = left_col if mask is None else jnp.logical_or(mask, left_col)
        elif dw == 1:
            mask = right_col if mask is None else jnp.logical_or(mask, right_col)
        return y if mask is None else jnp.where(mask, 0.0, y)

    # ---- forward_lpg ---------------------------------------------------------
    gap = jnp.mean(xp, axis=1, keepdims=True)      # AdaptiveAvgPool2d((1,1)) -> (C,1)
    x_gap = xp * gap                               # gap(x) * x
    x_q = dot(wq_ref[...], x_gap) + bq_ref[...]
    x_k = dot(wk_ref[...], x_gap) + bk_ref[...]
    x_v = jax.nn.sigmoid(x_q) * x_k + x_gap
    prompt_l = dot(wl_ref[...], x_v) + bl_ref[...]                     # (C, N)

    # ---- forward_hpg (pointwise convs + BN + conv_h pre-folded host-side) ----
    whd = whd_ref[...]                             # (C, 3) taps of the (3,1) dw conv
    ch = (whd[:, 0:1] * shifted(xp, -1, 0)
          + whd[:, 1:2] * xp
          + whd[:, 2:3] * shifted(xp, 1, 0)
          + bhd_ref[...])
    ch = jnp.maximum(ch, 0.0)
    wvd = wvd_ref[...]                             # (C, 3) taps of the (1,3) dw conv
    cv = (wvd[:, 0:1] * shifted(xp, 0, -1)
          + wvd[:, 1:2] * xp
          + wvd[:, 2:3] * shifted(xp, 0, 1)
          + bvd_ref[...])
    cv = jnp.maximum(cv, 0.0)
    prompt_h = dot(whp_ref[...], ch) + dot(wvp_ref[...], cv) + bhv_ref[...]  # (C, N)

    # ---- DualDynamicFusion ---------------------------------------------------
    x_v_ddf = dot(wo_ref[...], xp) + bo_ref[...]                       # (dh, N) linear_o
    # attn[q, k] = sum_c prompt_h[c, q] * prompt_l[c, k]; pad C to a full 8-sublane
    # tile so the transpose + matmul stay tile-aligned.
    pad = (-prompt_h.shape[0]) % 8
    if pad:
        zpad = jnp.zeros((pad, N), F32)
        ph = jnp.concatenate([prompt_h, zpad], axis=0)
        plk = jnp.concatenate([prompt_l, zpad], axis=0)
    else:
        ph, plk = prompt_h, prompt_l
    attn = dot(ph.T, plk) * scale                                      # (N, N)
    attn = attn - jnp.max(attn, axis=1, keepdims=True)
    w = jnp.exp(attn)
    w = w * pl.reciprocal(jnp.sum(w, axis=1, keepdims=True), approx=True)
    # prompt[d, q] = sum_k x_v_ddf[d, k] * w[q, k]
    prompt = lax.dot_general(x_v_ddf, w, (((1,), (1,)), ((), ())),
                             preferred_element_type=F32)               # (dh, N)
    prompt = dot(wp_ref[...], prompt) + bp_ref[...] + x_v_ddf          # linear_p + x_V
    mu = jnp.mean(prompt, axis=0, keepdims=True)                       # LayerNorm(dh)
    var = jnp.mean((prompt - mu) ** 2, axis=0, keepdims=True)
    out = (prompt - mu) * lax.rsqrt(var + 1e-5) * lng_ref[...] + lnb_ref[...]

    # ---- dsc: depthwise 3x3 + ReLU, 1x1 (BN pre-folded), residual -------------
    wdw = wdw_ref[...]                             # (dh, 9) row-major 3x3 taps
    acc = jnp.broadcast_to(bdw_ref[...], out.shape)
    k = 0
    for dh_ in (-1, 0, 1):
        for dw_ in (-1, 0, 1):
            acc = acc + wdw[:, k:k + 1] * shifted(out, dh_, dw_)
            k += 1
    y = jnp.maximum(acc, 0.0)
    z = dot(wpw_ref[...], y) + bpw_ref[...]
    out2 = z + out                                 # dsc(out) + out

    # ---- up: bilinear x2 (align_corners=True) as one matmul ------------------
    o_ref[0] = dot(out2, kup_ref[...])             # (dh, H*W)  lane-dense store


def cpgm_forward(x, p, *, roll_sign=1):
    B, C, H, W = x.shape
    dh = C // 2
    H2, W2 = H // 2, W // 2
    HW = H * W
    x_flat = x.reshape(B, C, HW)                   # contiguous reshape, no transpose

    # Fold BatchNorm(eval) affines and the trailing conv_h into the preceding 1x1
    # convs.  These are tiny (C,C) host/XLA-side matmuls done once per call; inside
    # the kernel they save one MXU matmul and several per-element affine passes per
    # grid step.
    whp_f = p["conv_h_w"] @ (p["sc_h_bn_s"] * p["sc_h_pw_w"])
    wvp_f = p["conv_h_w"] @ (p["sc_v_bn_s"] * p["sc_v_pw_w"])
    bhv_f = (p["conv_h_w"] @ (p["sc_h_bn_s"] * p["sc_h_pw_b"] + p["sc_h_bn_t"]
                              + p["sc_v_bn_s"] * p["sc_v_pw_b"] + p["sc_v_bn_t"])
             + p["conv_h_b"])
    wpw_f = p["dsc_bn_s"] * p["dsc_pw_w"]
    bpw_f = p["dsc_bn_s"] * p["dsc_pw_b"] + p["dsc_bn_t"]

    weights = [
        p["kpool"],
        p["wq"], p["bq"], p["wk"], p["bk"], p["wl"], p["bl"],
        p["sc_h_dw_w"], p["sc_h_dw_b"], p["sc_v_dw_w"], p["sc_v_dw_b"],
        whp_f, wvp_f, bhv_f,
        p["ddf_wo"], p["ddf_bo"], p["ddf_wp"], p["ddf_bp"],
        p["ddf_ln_g"], p["ddf_ln_b"],
        p["dsc_dw_w"], p["dsc_dw_b"], wpw_f, bpw_f,
        p["kup"],
    ]
    # constant block index across the grid -> weights stay resident in VMEM
    w_specs = [pl.BlockSpec(w.shape, lambda b: (0, 0)) for w in weights]

    out = pl.pallas_call(
        functools.partial(_cpgm_kernel, H2=H2, W2=W2,
                          scale=float(dh) ** -0.5, roll_sign=roll_sign),
        out_shape=jax.ShapeDtypeStruct((B, dh, HW), F32),
        grid=(B,),
        in_specs=[pl.BlockSpec((1, C, HW), lambda b: (b, 0, 0))] + w_specs,
        out_specs=pl.BlockSpec((1, dh, HW), lambda b: (b, 0, 0)),
        compiler_params=pltpu.CompilerParams(
            dimension_semantics=("parallel",)),
    )(x_flat, *weights)
    return out.reshape(B, dh, H, W)


# --------------------------------------------------------------------------- #
# Resampling matrices (separable / Kronecker form), parameter init
# --------------------------------------------------------------------------- #
def pool_matrix(n_out):
    m = np.zeros((n_out, 2 * n_out), np.float32)
    for i in range(n_out):
        m[i, 2 * i] = 0.5
        m[i, 2 * i + 1] = 0.5
    return m


def bilinear_matrix(n_out, n_in):                  # align_corners=True
    m = np.zeros((n_out, n_in), np.float32)
    if n_in == 1:
        m[:, 0] = 1.0
        return m
    for i in range(n_out):
        src = i * (n_in - 1) / (n_out - 1)
        i0 = min(int(np.floor(src)), n_in - 2)
        f = src - i0
        m[i, i0] += 1.0 - f
        m[i, i0 + 1] += f
    return m


def make_resample_mats(h, w):
    h2, w2 = h // 2, w // 2
    kpool = np.kron(pool_matrix(h2), pool_matrix(w2)).T             # (H*W, H2*W2)
    kup = np.kron(bilinear_matrix(h, h2), bilinear_matrix(w, w2)).T  # (H2*W2, H*W)
    return jnp.asarray(kpool), jnp.asarray(kup)


def init_params(key, c, h, w):
    dh = c // 2
    ks = iter(jax.random.split(key, 48))
    nrm = lambda shape, s=0.2: jax.random.normal(next(ks), shape, F32) * s
    uni = lambda shape, lo, hi: jax.random.uniform(next(ks), shape, F32, lo, hi)

    def bn_affine(n):
        gamma, beta = uni((n, 1), 0.8, 1.2), nrm((n, 1), 0.1)
        mean, var = nrm((n, 1), 0.1), uni((n, 1), 0.5, 1.5)
        s = gamma / jnp.sqrt(var + 1e-5)
        return s, beta - mean * s

    p = {}
    # LPG linears (stored (out, in); biases as (out, 1) columns)
    p["wq"], p["bq"] = nrm((c, c)), nrm((c, 1), 0.1)
    p["wk"], p["bk"] = nrm((c, c)), nrm((c, 1), 0.1)
    p["wl"], p["bl"] = nrm((c, c)), nrm((c, 1), 0.1)
    # HPG branches
    p["sc_h_dw_w"], p["sc_h_dw_b"] = nrm((c, 3)), nrm((c, 1), 0.1)
    p["sc_h_pw_w"], p["sc_h_pw_b"] = nrm((c, c)), nrm((c, 1), 0.1)
    p["sc_h_bn_s"], p["sc_h_bn_t"] = bn_affine(c)
    p["sc_v_dw_w"], p["sc_v_dw_b"] = nrm((c, 3)), nrm((c, 1), 0.1)
    p["sc_v_pw_w"], p["sc_v_pw_b"] = nrm((c, c)), nrm((c, 1), 0.1)
    p["sc_v_bn_s"], p["sc_v_bn_t"] = bn_affine(c)
    p["conv_h_w"], p["conv_h_b"] = nrm((c, c)), nrm((c, 1), 0.1)
    # DualDynamicFusion
    p["ddf_wo"], p["ddf_bo"] = nrm((dh, c)), nrm((dh, 1), 0.1)
    p["ddf_wp"], p["ddf_bp"] = nrm((dh, dh)), nrm((dh, 1), 0.1)
    p["ddf_ln_g"], p["ddf_ln_b"] = uni((dh, 1), 0.8, 1.2), nrm((dh, 1), 0.1)
    # dsc (depthwise separable) on dh channels
    p["dsc_dw_w"], p["dsc_dw_b"] = nrm((dh, 9)), nrm((dh, 1), 0.1)
    p["dsc_pw_w"], p["dsc_pw_b"] = nrm((dh, dh)), nrm((dh, 1), 0.1)
    p["dsc_bn_s"], p["dsc_bn_t"] = bn_affine(dh)
    # resampling matrices
    p["kpool"], p["kup"] = make_resample_mats(h, w)
    return p


# --------------------------------------------------------------------------- #
# Pure-JAX reference of the same consistent reading of the module
# --------------------------------------------------------------------------- #
def cpgm_reference(x, p):
    B, C, H, W = x.shape
    dh = C // 2
    H2, W2 = H // 2, W // 2
    N = H2 * W2

    def cvec(v):
        return v[:, 0][None, :, None, None]

    def dwconv(v, w, b, kh, kw):
        cv_ = v.shape[1]
        ker = w.reshape(cv_, 1, kh, kw)
        out = lax.conv_general_dilated(
            v, ker, window_strides=(1, 1),
            padding=((kh // 2, kh // 2), (kw // 2, kw // 2)),
            dimension_numbers=("NCHW", "OIHW", "NCHW"),
            feature_group_count=cv_)
        return out + cvec(b)

    def conv1x1(v, w, b):
        return jnp.einsum("bchw,oc->bohw", v, w) + cvec(b)

    xp = x.reshape(B, C, H2, 2, W2, 2).mean(axis=(3, 5))            # AvgPool2d(2,2)

    # forward_lpg
    gap = xp.mean(axis=(2, 3), keepdims=True)
    xg = (gap * xp).reshape(B, C, N).transpose(0, 2, 1)             # (B,N,C) tokens
    xq = xg @ p["wq"].T + p["bq"][:, 0]
    xk = xg @ p["wk"].T + p["bk"][:, 0]
    xv = jax.nn.sigmoid(xq) * xk + xg
    prompt_l = xv @ p["wl"].T + p["bl"][:, 0]
    prompt_l = prompt_l.transpose(0, 2, 1).reshape(B, C, H2, W2)

    # forward_hpg
    h_act = jax.nn.relu(dwconv(xp, p["sc_h_dw_w"], p["sc_h_dw_b"], 3, 1))
    v_act = jax.nn.relu(dwconv(xp, p["sc_v_dw_w"], p["sc_v_dw_b"], 1, 3))
    yh = conv1x1(h_act, p["sc_h_pw_w"], p["sc_h_pw_b"])
    yh = yh * cvec(p["sc_h_bn_s"]) + cvec(p["sc_h_bn_t"])
    yv = conv1x1(v_act, p["sc_v_pw_w"], p["sc_v_pw_b"])
    yv = yv * cvec(p["sc_v_bn_s"]) + cvec(p["sc_v_bn_t"])
    prompt_h = conv1x1(yh + yv, p["conv_h_w"], p["conv_h_b"])

    # DualDynamicFusion
    x_tok = xp.reshape(B, C, N).transpose(0, 2, 1)
    x_V = x_tok @ p["ddf_wo"].T + p["ddf_bo"][:, 0]
    Kt = prompt_l.reshape(B, C, N).transpose(0, 2, 1)
    Qt = prompt_h.reshape(B, C, N).transpose(0, 2, 1)
    attn = jnp.einsum("bqc,bkc->bqk", Qt, Kt) * (float(dh) ** -0.5)
    wgt = jax.nn.softmax(attn, axis=-1)
    prm = jnp.einsum("bqk,bkd->bqd", wgt, x_V)
    prm = prm @ p["ddf_wp"].T + p["ddf_bp"][:, 0] + x_V
    mu = prm.mean(-1, keepdims=True)
    var = ((prm - mu) ** 2).mean(-1, keepdims=True)
    out = (prm - mu) / jnp.sqrt(var + 1e-5) * p["ddf_ln_g"][:, 0] + p["ddf_ln_b"][:, 0]
    out = out.transpose(0, 2, 1).reshape(B, dh, H2, W2)

    # dsc(out) + out
    y = jax.nn.relu(dwconv(out, p["dsc_dw_w"], p["dsc_dw_b"], 3, 3))
    z = conv1x1(y, p["dsc_pw_w"], p["dsc_pw_b"])
    z = z * cvec(p["dsc_bn_s"]) + cvec(p["dsc_bn_t"])
    out = z + out

    # upsample x2 bilinear (align_corners=True), separable
    mh = jnp.asarray(bilinear_matrix(H, H2))
    mw = jnp.asarray(bilinear_matrix(W, W2))
    return jnp.einsum("bchw,Hh,Ww->bcHW", out, mh, mw)


if __name__ == "__main__":
    key = jax.random.PRNGKey(0)
    k_x, k_p = jax.random.split(key)
    # C = CPGM.output_channels (module constructed with input_channels=8).
    # H=16, W=32 so the pooled token count (H/2)*(W/2) = 128 fills the lane width.
    B, C, H, W = 2, 4, 16, 32
    x = jax.random.normal(k_x, (B, C, H, W), F32)
    params = init_params(k_p, C, H, W)

    roll_sign = detect_roll_sign()
    fwd = jax.jit(functools.partial(cpgm_forward, roll_sign=roll_sign))
    out = jax.block_until_ready(fwd(x, params))

    assert out.shape == (B, C // 2, H, W), out.shape
    assert bool(jnp.all(jnp.isfinite(out)))

    ref = cpgm_reference(x, params)
    err = float(jnp.max(jnp.abs(out - ref)))
    # loose tolerance: pl.reciprocal(approx=True) in the softmax plus a LayerNorm
    # over only 2 channels can amplify ulp-level drift
    assert err < 5e-2, f"max abs err vs reference: {err}"
    print("KERNEL_OK")
</pallas_src>

<mosaic_0001>
module attributes {stable_mosaic.version = 11 : i64} {
  func.func @_roll_probe_kernel(%arg0: memref<8x128xf32, #tpu.memory_space<vmem>>, %arg1: memref<8x128xf32, #tpu.memory_space<vmem>>) attributes {dimension_semantics = [], scalar_prefetch = 0 : i64, scratch_operands = 0 : i64, tpu.core_type = #tpu.core_type<tc>} {
    %c0 = arith.constant 0 : index
    %c0_0 = arith.constant 0 : index
    %0 = vector.load %arg0[%c0, %c0_0] : memref<8x128xf32, #tpu.memory_space<vmem>>, vector<8x128xf32>
    %c1_i32 = arith.constant 1 : i32
    %1 = tpu.dynamic_rotate %0 by %c1_i32 dim 1 : vector<8x128xf32>, i32 -> vector<8x128xf32>
    %c0_1 = arith.constant 0 : index
    %c0_2 = arith.constant 0 : index
    %2 = vector.load %arg1[%c0_1, %c0_2] : memref<8x128xf32, #tpu.memory_space<vmem>>, vector<8x128xf32>
    tpu.vector_store %arg1[%c0_1, %c0_2], %1 {strides = array<i32>} : memref<8x128xf32, #tpu.memory_space<vmem>>, vector<8x128xf32>,
    return
  }
}

</mosaic_0001>

<llo_original>
// kernel: tpu_custom_call.1
$region0: #{tpu_custom_call.1}
  #allocation0 [shape = 'u32[]', space=smem, size = 0x4, offset = 0x4, fixed_abs, tag = 'smem constant byte address 0x4 - core index']
  #allocation1 [shape = 'u32[144,128]{1,0:T(1,128)}', space=vmem, size = 0x12000, scoped, tag = 'internal scratch']
  %s0 = inlined_call_operand.hbm [shape: f32[8,128], index: 0, kind: input, shape index: {}]
  %s1 = inlined_call_operand.hbm [shape: f32[8,128], index: 1, kind: output, shape index: {}]
  %s2 = sld [smem:[#allocation0]]
  $region18: #{tpu_custom_call.1} parent=0
    _
  %s4 = ssub.s32 1, %s2
  %s5 = scalar_select 0, %s4, %s2
  $region1: #{tpu_custom_call.1} parent=0
    #allocation2 [shape = 'u8[4096]{0}', space=vmem, size = 0x1000, scoped, tag = 'input window, operand 0, single buffered']
    #allocation3 [shape = 's32[1]{0}', space=sflag, size = 0x4, scoped, tag = 'scoped memory for tpu_custom_call.1']
    #allocation4 [shape = 's32[1]{0}', space=sflag, size = 0x4, scoped, tag = 'scoped memory for tpu_custom_call.1']
    #allocation5 [shape = 'u8[4096]{0}', space=vmem, size = 0x1000, scoped, tag = 'output window, operand 0, single buffered']
    %6 = vsyncpa [#allocation3], 0
    %7 = vsyncpa [#allocation4], 0
    // Predicated region
    $region2: #{tpu_custom_call.1} parent=1 // pred_check
      _
    $region3: #{tpu_custom_call.1} parent=1 // pred_check_branch
      %9 = sbr.rel (0) target = $region5
    $region4: #{tpu_custom_call.1} parent=1 // pred_region
      %s11 = ssub.s32 128, 128
      %12 = vsyncadd [#allocation3], %s11
      %s14 = sshll.u32 [#allocation2], 4
      %s15 = int_to_ptr.vmem [resolvable:$true] %s14
      %17 = dma.hbm_to_vmem [thread:$0]  %s0, 128, %s15, [#allocation3]
    $region5: #{tpu_custom_call.1} parent=1 // pred_fallthru
      _
    // Predicated region
    $region6: #{tpu_custom_call.1} parent=1 // pred_check
      _
    $region7: #{tpu_custom_call.1} parent=1 // pred_check_branch
      %19 = sbr.rel (0) target = $region9
    $region8: #{tpu_custom_call.1} parent=1 // pred_region
      %20 = dma.done [#allocation3], 128
    $region9: #{tpu_custom_call.1} parent=1 // pred_fallthru
      _
    %v21 = vld [vmem:[#allocation2] sm:$0xff]
    %22 = vrot.lane.b32.xlu0 %v21, 1
    %v23 = vpop.permute.xlu0 %22
    %24 = vst [vmem:[#allocation5] sm:$0xff] %v23
    // Predicated region
    $region10: #{tpu_custom_call.1} parent=1 // pred_check
      _
    $region11: #{tpu_custom_call.1} parent=1 // pred_check_branch
      %26 = sbr.rel (0) target = $region13
    $region12: #{tpu_custom_call.1} parent=1 // pred_region
      %s28 = ssub.s32 128, 128
      %29 = vsyncadd [#allocation4], %s28
      %s31 = sshll.u32 [#allocation5], 4
      %s32 = int_to_ptr.vmem [resolvable:$true] %s31
      %34 = dma.vmem_to_hbm [thread:$0]  %s32, 128, %s1, [#allocation4]
    $region13: #{tpu_custom_call.1} parent=1 // pred_fallthru
      _
    // Predicated region
    $region14: #{tpu_custom_call.1} parent=1 // pred_check
      _
    $region15: #{tpu_custom_call.1} parent=1 // pred_check_branch
      %36 = sbr.rel (0) target = $region17
    $region16: #{tpu_custom_call.1} parent=1 // pred_region
      %37 = dma.done [#allocation4], 128
    $region17: #{tpu_custom_call.1} parent=1 // pred_fallthru
      _
    %38 = vsyncpa [#allocation3], 1
    %39 = vsyncpa [#allocation4], 1

</llo_original>
